<compile_context>
chip_gen: v7x
topology: tpu7x:2x2x1
jax: 0.10.0
libtpu: 0.0.40
codegen_flags: <defaults>
</compile_context>

<pallas_src>
import jax
import jax.numpy as jnp
from jax.experimental import pallas as pl
from jax.experimental.pallas import tpu as pltpu


def value_layer_kernel(x_ref, w_ref, b_ref, o_ref, acc_ref):
    # x_ref: (bm, bn, H) VMEM   w_ref: (1, H) VMEM (resident)
    # b_ref: (1, 1) SMEM        o_ref: (1, bm) VMEM (lane-dense output slab)
    # acc_ref: (bm, H) f32 VMEM scratch — running max over the node axis.
    j = pl.program_id(1)

    @pl.when(j == 0)
    def _init():
        acc_ref[...] = jnp.full(acc_ref.shape, -jnp.inf, dtype=acc_ref.dtype)

    # Block-local max over the node tile, accumulated as an elementwise running
    # max across N tiles (f32 math even if the input is bf16).
    x = x_ref[...].astype(jnp.float32)                       # (bm, bn, H)
    acc_ref[...] = jnp.maximum(acc_ref[...], jnp.max(x, axis=1))

    @pl.when(j == pl.num_programs(1) - 1)
    def _finalize():
        w = w_ref[...].astype(jnp.float32)                   # (1, H)
        # Linear(H, 1): VPU multiply + lane reduce — no MXU, no transpose.
        val = jnp.sum(acc_ref[...] * w, axis=-1)             # (bm,)
        val = val + b_ref[0, 0]
        o_ref[...] = val.reshape(1, -1).astype(o_ref.dtype)  # (1, bm) store


def value_layer(x, weight, bias, *, target_block_bytes=4 * 1024 * 1024):
    """x: (B, N, H), weight: (1, H), bias: (1,)  ->  (B, 1)."""
    B, N, H = x.shape
    assert weight.shape == (1, H), weight.shape
    bias2d = bias.reshape(1, 1).astype(jnp.float32)
    itemsize = jnp.dtype(x.dtype).itemsize

    # Batch tile: must keep the (1, bm) output block legal (bm == B or bm % 128 == 0).
    bm = 128 if (B > 128 and B % 128 == 0) else B

    # Node tile: divides N, multiple of 8 (or == N), and keeps the x block small
    # enough that double-buffering stays well under scoped VMEM (v7x: 64 MiB/TC).
    bn = N
    if bm * N * H * itemsize > target_block_bytes:
        for cand in range(N, 0, -1):
            if (N % cand == 0 and (cand % 8 == 0 or cand == N)
                    and bm * cand * H * itemsize <= target_block_bytes):
                bn = cand
                break

    grid = (B // bm, N // bn)

    out = pl.pallas_call(
        value_layer_kernel,
        out_shape=jax.ShapeDtypeStruct((1, B), x.dtype),
        grid=grid,
        in_specs=[
            pl.BlockSpec((bm, bn, H), lambda i, j: (i, j, 0)),       # streamed x
            pl.BlockSpec((1, H), lambda i, j: (0, 0)),               # resident weight
            pl.BlockSpec(memory_space=pltpu.SMEM),                   # bias scalar
        ],
        out_specs=pl.BlockSpec((1, bm), lambda i, j: (0, i)),
        scratch_shapes=[pltpu.VMEM((bm, H), jnp.float32)],
        compiler_params=pltpu.CompilerParams(
            dimension_semantics=("parallel", "arbitrary"),
        ),
        cost_estimate=pl.CostEstimate(
            flops=B * N * H + 2 * B * H,
            transcendentals=0,
            bytes_accessed=B * N * H * itemsize + H * 4 + 4 + B * itemsize,
        ),
    )(x, weight, bias2d)

    return out.reshape(B, 1)


def _reference(x, weight, bias):
    return jnp.max(x, axis=1) @ weight.T + bias


if __name__ == "__main__":
    key = jax.random.PRNGKey(0)
    kx, kw, kb = jax.random.split(key, 3)

    # Shapes implied by the module: batch=2, nodes=8, hidden_features=32.
    B, N, H = 2, 8, 32
    x = jax.random.normal(kx, (B, N, H), dtype=jnp.float32)
    bound = 1.0 / jnp.sqrt(jnp.float32(H))
    weight = jax.random.uniform(kw, (1, H), minval=-bound, maxval=bound, dtype=jnp.float32)
    bias = jax.random.uniform(kb, (1,), minval=-bound, maxval=bound, dtype=jnp.float32)

    out = value_layer(x, weight, bias)
    jax.block_until_ready(out)
    ref = _reference(x, weight, bias)
    assert out.shape == (B, 1), out.shape
    assert jnp.allclose(out, ref, atol=1e-5, rtol=1e-5), (out, ref)

    # Second check: force multiple N tiles to exercise the running-max
    # init / accumulate / finalize path (grid = (1, 4)).
    B2, N2, H2 = 4, 32, 32
    k2x, k2w, k2b = jax.random.split(jax.random.PRNGKey(1), 3)
    x2 = jax.random.normal(k2x, (B2, N2, H2), dtype=jnp.float32)
    w2 = jax.random.uniform(k2w, (1, H2), minval=-bound, maxval=bound, dtype=jnp.float32)
    b2 = jax.random.uniform(k2b, (1,), minval=-bound, maxval=bound, dtype=jnp.float32)
    out2 = value_layer(x2, w2, b2, target_block_bytes=B2 * 8 * H2 * 4)
    jax.block_until_ready(out2)
    ref2 = _reference(x2, w2, b2)
    assert out2.shape == (B2, 1), out2.shape
    assert jnp.allclose(out2, ref2, atol=1e-5, rtol=1e-5), (out2, ref2)

    print("KERNEL_OK")
</pallas_src>

<mosaic_0001>
module attributes {stable_mosaic.version = 11 : i64} {
  func.func @value_layer_kernel(%arg0: i32, %arg1: i32, %arg2: memref<2x8x32xf32, #tpu.memory_space<vmem>>, %arg3: memref<1x32xf32, #tpu.memory_space<vmem>>, %arg4: memref<1x1xf32, #tpu.memory_space<smem>>, %arg5: memref<1x2xf32, #tpu.memory_space<vmem>>, %arg6: memref<2x32xf32, #tpu.memory_space<vmem>>) attributes {dimension_semantics = [#tpu.dimension_semantics<parallel>, #tpu.dimension_semantics<arbitrary>], iteration_bounds = array<i64: 1, 1>, scalar_prefetch = 0 : i64, scratch_operands = 1 : i64, tpu.core_type = #tpu.core_type<tc>, window_params = [{transform_indices = @transform_0, window_bounds = array<i64: 2, 8, 32>}, {pipeline_mode = #tpu.pipeline_mode<synchronous>, transform_indices = @transform_1, window_bounds = array<i64: 1, 32>}, {transform_indices = @transform_2, window_bounds = array<i64: 1, 1>}, {transform_indices = @transform_3, window_bounds = array<i64: 1, 2>}]} {
    %c0_i32 = arith.constant 0 : i32
    %0 = arith.cmpi eq, %arg1, %c0_i32 : i32
    %1 = arith.extui %0 : i1 to i32
    %c0_i32_0 = arith.constant 0 : i32
    %2 = arith.cmpi ne, %1, %c0_i32_0 : i32
    scf.if %2 {
      %cst_9 = arith.constant 0xFF800000 : f32
      %11 = vector.broadcast %cst_9 : f32 to vector<2x32xf32>
      %c0_10 = arith.constant 0 : index
      %c0_11 = arith.constant 0 : index
      %12 = vector.load %arg6[%c0_10, %c0_11] : memref<2x32xf32, #tpu.memory_space<vmem>>, vector<2x32xf32>
      tpu.vector_store %arg6[%c0_10, %c0_11], %11 {strides = array<i32>} : memref<2x32xf32, #tpu.memory_space<vmem>>, vector<2x32xf32>,
    } else {
    }
    %c0 = arith.constant 0 : index
    %c0_1 = arith.constant 0 : index
    %c0_2 = arith.constant 0 : index
    %3 = vector.load %arg2[%c0, %c0_1, %c0_2] : memref<2x8x32xf32, #tpu.memory_space<vmem>>, vector<2x8x32xf32>
    %c0_3 = arith.constant 0 : index
    %c0_4 = arith.constant 0 : index
    %4 = vector.load %arg6[%c0_3, %c0_4] : memref<2x32xf32, #tpu.memory_space<vmem>>, vector<2x32xf32>
    %cst = arith.constant dense<0xFF800000> : vector<2x32xf32>
    %5 = vector.multi_reduction <maximumf>, %3, %cst [1] : vector<2x8x32xf32> to vector<2x32xf32>
    %6 = arith.maximumf %4, %5 : vector<2x32xf32>
    %c0_5 = arith.constant 0 : index
    %c0_6 = arith.constant 0 : index
    %7 = vector.load %arg6[%c0_5, %c0_6] : memref<2x32xf32, #tpu.memory_space<vmem>>, vector<2x32xf32>
    tpu.vector_store %arg6[%c0_5, %c0_6], %6 {strides = array<i32>} : memref<2x32xf32, #tpu.memory_space<vmem>>, vector<2x32xf32>,
    %c0_i32_7 = arith.constant 0 : i32
    %8 = arith.cmpi eq, %arg1, %c0_i32_7 : i32
    %9 = arith.extui %8 : i1 to i32
    %c0_i32_8 = arith.constant 0 : i32
    %10 = arith.cmpi ne, %9, %c0_i32_8 : i32
    scf.if %10 {
      %c0_9 = arith.constant 0 : index
      %c0_10 = arith.constant 0 : index
      %11 = vector.load %arg3[%c0_9, %c0_10] : memref<1x32xf32, #tpu.memory_space<vmem>>, vector<1x32xf32>
      %c0_11 = arith.constant 0 : index
      %c0_12 = arith.constant 0 : index
      %12 = vector.load %arg6[%c0_11, %c0_12] : memref<2x32xf32, #tpu.memory_space<vmem>>, vector<2x32xf32>
      %13 = vector.broadcast %11 : vector<1x32xf32> to vector<2x32xf32>
      %14 = arith.mulf %12, %13 : vector<2x32xf32>
      %cst_13 = arith.constant dense<0.000000e+00> : vector<2xf32>
      %15 = vector.multi_reduction <add>, %14, %cst_13 [1] : vector<2x32xf32> to vector<2xf32>
      %c0_14 = arith.constant 0 : index
      %c0_15 = arith.constant 0 : index
      %16 = memref.load %arg4[%c0_14, %c0_15] : memref<1x1xf32, #tpu.memory_space<smem>>
      %17 = vector.broadcast %16 : f32 to vector<2xf32>
      %18 = arith.addf %15, %17 : vector<2xf32>
      %19 = vector.shape_cast %18 : vector<2xf32> to vector<1x2xf32>
      %c0_16 = arith.constant 0 : index
      %c0_17 = arith.constant 0 : index
      %20 = vector.load %arg5[%c0_16, %c0_17] : memref<1x2xf32, #tpu.memory_space<vmem>>, vector<1x2xf32>
      tpu.vector_store %arg5[%c0_16, %c0_17], %19 {strides = array<i32>} : memref<1x2xf32, #tpu.memory_space<vmem>>, vector<1x2xf32>,
    } else {
    }
    return
  }
  func.func @transform_0(%arg0: i32, %arg1: i32) -> (i32, i32, i32) {
    %c0_i32 = arith.constant 0 : i32
    %c0_i32_0 = arith.constant 0 : i32
    return %arg0, %arg1, %c0_i32 : i32, i32, i32
  }
  func.func @transform_1(%arg0: i32, %arg1: i32) -> (i32, i32) {
    %c0_i32 = arith.constant 0 : i32
    %c0_i32_0 = arith.constant 0 : i32
    %c0_i32_1 = arith.constant 0 : i32
    return %c0_i32, %c0_i32_0 : i32, i32
  }
  func.func @transform_2(%arg0: i32, %arg1: i32) -> (i32, i32) {
    %c0_i32 = arith.constant 0 : i32
    %c0_i32_0 = arith.constant 0 : i32
    %c0_i32_1 = arith.constant 0 : i32
    return %c0_i32, %c0_i32_0 : i32, i32
  }
  func.func @transform_3(%arg0: i32, %arg1: i32) -> (i32, i32) {
    %c0_i32 = arith.constant 0 : i32
    %c0_i32_0 = arith.constant 0 : i32
    return %c0_i32, %arg0 : i32, i32
  }
}

</mosaic_0001>

<llo_original>
// kernel: tpu_custom_call.1
$region0: #{tpu_custom_call.1}
  #allocation0 [shape = 'u32[]', space=smem, size = 0x4, offset = 0x4, fixed_abs, tag = 'smem constant byte address 0x4 - core index']
  #allocation1 [shape = 'u32[144,128]{1,0:T(1,128)}', space=vmem, size = 0x12000, scoped, tag = 'internal scratch']
  #allocation2 [shape = 'f32[2,32]{1,0:T(2,128)}', space=vmem, size = 0x400, scoped, tag = 'scratch operand']
  #allocation3 [shape = 'f32[1,1]{1,0:T(1,128)S(6)}', space=smem, size = 0x200, scoped, tag = 'scoped memory for tpu_custom_call.1']
  %s0 = inlined_call_operand.hbm [shape: f32[2,8,32], index: 0, kind: input, shape index: {}]
  %s1 = inlined_call_operand.vmem [shape: f32[1,32], index: 1, kind: input, shape index: {}]
  %s2 = inlined_call_operand.<no memory space> [shape: f32[1,1], index: 2, kind: input, shape index: {}]
  %s3 = inlined_call_operand.hbm [shape: f32[1,2], index: 3, kind: output, shape index: {}]
  %s4 = sld [smem:[#allocation0]]
  $region34: #{tpu_custom_call.1} parent=0
    _
  %s6 = ssub.s32 1, %s4
  %s7 = scalar_select 0, %s6, %s4
  %8 = sst [smem:[#allocation3]] %s2
  $region1: #{tpu_custom_call.1} parent=0
    #allocation4 [shape = 'u8[8192]{0}', space=vmem, size = 0x2000, scoped, tag = 'input window, operand 0, single buffered']
    #allocation5 [shape = 's32[1]{0}', space=sflag, size = 0x4, scoped, tag = 'scoped memory for tpu_custom_call.1']
    #allocation6 [shape = 's32[1]{0}', space=sflag, size = 0x4, scoped, tag = 'scoped memory for tpu_custom_call.1']
    #allocation7 [shape = 'u8[512]{0}', space=vmem, size = 0x400, scoped, tag = 'output window, operand 0, single buffered']
    %9 = vsyncpa [#allocation5], 0
    %10 = vsyncpa [#allocation6], 0
    // Predicated region
    $region2: #{tpu_custom_call.1} parent=1 // pred_check
      _
    $region3: #{tpu_custom_call.1} parent=1 // pred_check_branch
      %12 = sbr.rel (0) target = $region5
    $region4: #{tpu_custom_call.1} parent=1 // pred_region
      %s14 = ssub.s32 256, 256
      %15 = vsyncadd [#allocation5], %s14
      %s16 = sshll.u32 [#allocation4], 4
      %s17 = int_to_ptr.vmem [resolvable:$true] %s16
      %22 = dma.hbm_to_vmem [thread:$0]  %s0, 256, %s17, [#allocation5], 128, 128, 8
    $region5: #{tpu_custom_call.1} parent=1 // pred_fallthru
      _
    // Predicated region
    $region6: #{tpu_custom_call.1} parent=1 // pred_check
      _
    $region7: #{tpu_custom_call.1} parent=1 // pred_check_branch
      %24 = sbr.rel (0) target = $region9
    $region8: #{tpu_custom_call.1} parent=1 // pred_region
      _
    $region9: #{tpu_custom_call.1} parent=1 // pred_fallthru
      _
    // Predicated region
    $region10: #{tpu_custom_call.1} parent=1 // pred_check
      _
    $region11: #{tpu_custom_call.1} parent=1 // pred_check_branch
      %26 = sbr.rel (0) target = $region13
    $region12: #{tpu_custom_call.1} parent=1 // pred_region
      _
    $region13: #{tpu_custom_call.1} parent=1 // pred_fallthru
      _
    // Predicated region
    $region14: #{tpu_custom_call.1} parent=1 // pred_check
      _
    $region15: #{tpu_custom_call.1} parent=1 // pred_check_branch
      %28 = sbr.rel (0) target = $region17
    $region16: #{tpu_custom_call.1} parent=1 // pred_region
      %29 = dma.done [#allocation5], 256
    $region17: #{tpu_custom_call.1} parent=1 // pred_fallthru
      _
    %p30 = scmp.eq.s32.totalorder 0, 0
    // Predicated region
    $region18: #{tpu_custom_call.1} parent=1 // pred_check
      %p31 = pneg %p30
    $region19: #{tpu_custom_call.1} parent=1 // pred_check_branch
      %33 = sbr.rel (%p31) target = $region21
    $region20: #{tpu_custom_call.1} parent=1 // pred_region
      %vm34 = vcmask 254976
      %35 = vst.msk [vmem:[#allocation2] sm:$0x3] %vm34, -inf
    $region21: #{tpu_custom_call.1} parent=1 // pred_fallthru
      _
    %v36 = vld [vmem:[#allocation4] sm:$0xff]
    %v37 = vld [vmem:[#allocation4 + $0x8] sm:$0xff]
    %v38 = vld [vmem:[#allocation2] sm:$0x3]
    %vm39 = vcmask 261120
    %v40 = vsel %vm39, %v36, -inf
    %v41 = vrot.slane %v40, 4
    %v42 = vmax.f32 %v40, %v41
    %v43 = vrot.slane %v42, 2
    %v44 = vmax.f32 %v42, %v43
    %v45 = vrot.slane %v44, 1
    %v46 = vmax.f32 %v44, %v45
    %v47 = vsel %vm39, %v37, -inf
    %v48 = vrot.slane %v47, 4
    %v49 = vmax.f32 %v47, %v48
    %v50 = vrot.slane %v49, 2
    %v51 = vmax.f32 %v49, %v50
    %v52 = vrot.slane %v51, 1
    %v53 = vmax.f32 %v51, %v52
    %vm56 = vcmask 1041409
    %v57 = vsel %vm56, %v53, %v46
    %v59 = vmax.f32 %v38, %v57
    %vm60 = vcmask 254976
    %61 = vst.msk [vmem:[#allocation2] sm:$0x3] %vm60, %v59
    // Predicated region
    $region22: #{tpu_custom_call.1} parent=1 // pred_check
      %p62 = pneg %p30
    $region23: #{tpu_custom_call.1} parent=1 // pred_check_branch
      %64 = sbr.rel (%p62) target = $region25
    $region24: #{tpu_custom_call.1} parent=1 // pred_region
      %v65 = vld [vmem:[%s1] sm:$0x1]
      %v66 = vld [vmem:[#allocation2] sm:$0x3]
      %v68 = vlaneseq
      %v69 = vshrl.u32 %v68, 7
      %v70 = vsub.s32 0, %v69
      %v71 = vrot.slane %v65, %v70
      %v73 = vmul.f32 %v66, %v71
      %v74 = vsel %vm60, %v73, 0.0
      %75 = vadd.xlane.f32.xlu0 %v74
      %v76 = vpop.xlane.xlu0 %75
      %s77 = sld [smem:[#allocation3]]
      %v78 = vstv %s77
      %v79 = vadd.f32 %v76, %v78
      %v81 = vlaneseq
      %v82 = vand.u32 %v81, 127
      %v83 = vlaneseq
      %v84 = vshrl.u32 %v83, 7
      %v85 = vsub.s32 %v82, %v84
      %v86 = vrot.slane %v79, %v85
      %vm88 = vcmask 8192
      %89 = vst.msk [vmem:[#allocation7] sm:$0x1] %vm88, %v86
    $region25: #{tpu_custom_call.1} parent=1 // pred_fallthru
      _
    // Predicated region
    $region26: #{tpu_custom_call.1} parent=1 // pred_check
      _
    $region27: #{tpu_custom_call.1} parent=1 // pred_check_branch
      %91 = sbr.rel (0) target = $region29
    $region28: #{tpu_custom_call.1} parent=1 // pred_region
      %s93 = ssub.s32 16, 16
      %94 = vsyncadd [#allocation6], %s93
      %s96 = sshll.u32 [#allocation7], 4
      %s97 = int_to_ptr.vmem [resolvable:$true] %s96
      %99 = dma.vmem_to_hbm [thread:$0]  %s97, 16, %s3, [#allocation6]
    $region29: #{tpu_custom_call.1} parent=1 // pred_fallthru
      _
    // Predicated region
    $region30: #{tpu_custom_call.1} parent=1 // pred_check
      _
    $region31: #{tpu_custom_call.1} parent=1 // pred_check_branch
      %101 = sbr.rel (0) target = $region33
    $region32: #{tpu_custom_call.1} parent=1 // pred_region
      %102 = dma.done [#allocation6], 16
    $region33: #{tpu_custom_call.1} parent=1 // pred_fallthru
      _
    %103 = vsyncpa [#allocation5], 1
    %104 = vsyncpa [#allocation6], 1

</llo_original>
